<compile_context>
chip_gen: v7x
topology: tpu7x:2x2x1
jax: 0.10.0
libtpu: 0.0.40
codegen_flags: <defaults>
</compile_context>

<pallas_src>
import math
import functools

import jax
import jax.numpy as jnp
from jax.experimental import pallas as pl
from jax.experimental.pallas import tpu as pltpu


# ------------------------------ in-kernel helpers ------------------------------

def _layernorm(x, g, b, eps=1e-5):
    # PyTorch nn.LayerNorm: biased variance over last dim, default eps=1e-5.
    mu = jnp.mean(x, axis=-1, keepdims=True)
    xc = x - mu
    var = jnp.mean(xc * xc, axis=-1, keepdims=True)
    return xc * jax.lax.rsqrt(var + eps) * g + b


def _erf(z):
    # Abramowitz & Stegun 7.1.26 rational approximation (|err| < 1.5e-7).
    a1, a2, a3, a4, a5 = 0.254829592, -0.284496736, 1.421413741, -1.453152027, 1.061405429
    p = 0.3275911
    za = jnp.abs(z)
    t = 1.0 / (1.0 + p * za)
    poly = ((((a5 * t + a4) * t + a3) * t + a2) * t + a1) * t
    y = 1.0 - poly * jnp.exp(-za * za)
    return jnp.where(z >= 0, y, -y)


def _gelu_exact(x):
    # nn.GELU() default = exact erf GELU.
    return 0.5 * x * (1.0 + _erf(x * (1.0 / math.sqrt(2.0))))


# ------------------------------- kv (per-batch) kernels ------------------------

def _kv_sr_kernel(xg_ref, vec_ref, kvb_ref, srw_ref, kvw_ref, kv_ref, *, nr, nr_pad):
    # xg_ref : (Nr, sr*sr*C) bf16   LN1(x) im2col-gathered in the wrapper
    # vec_ref: (3, C)        f32    [sr_b, srn_g, srn_b]
    # kvb_ref: (1, 2C)       f32
    # srw_ref: (sr*sr*C, C)  bf16   flattened conv weight
    # kvw_ref: (C, 2C)       bf16
    # kv_ref : (Nr_pad, 2C)  bf16   output (padded rows are zero)
    f32, bf16 = jnp.float32, jnp.bfloat16
    vec = vec_ref[...]
    srb, sng, snb = vec[0:1], vec[1:2], vec[2:3]
    xr = jnp.dot(xg_ref[...], srw_ref[...], preferred_element_type=f32) + srb
    xr = _layernorm(xr, sng, snb)
    kv = jnp.dot(xr.astype(bf16), kvw_ref[...], preferred_element_type=f32) + kvb_ref[...]
    if nr_pad > nr:
        kv_ref[...] = jnp.zeros_like(kv_ref)
    kv_ref[0:nr, :] = kv.astype(kv_ref.dtype)


def _kv_plain_kernel(xn_ref, kvb_ref, kvw_ref, kv_ref, *, nr, nr_pad):
    # sr_ratio == 1: kv comes directly from LN1(x); no conv weights at all.
    f32 = jnp.float32
    kv = jnp.dot(xn_ref[...], kvw_ref[...], preferred_element_type=f32) + kvb_ref[...]
    if nr_pad > nr:
        kv_ref[...] = jnp.zeros_like(kv_ref)
    kv_ref[0:nr, :] = kv.astype(kv_ref.dtype)


# ------------------------------- main per-tile kernel --------------------------

# rows of the packed (7, C) vector-parameter input
_N1G, _N1B, _QB, _PB, _N2G, _N2B, _F2B = range(7)


def _pvt_main_kernel(x_ref, kv_ref, vec_ref, f1b_ref,
                     qw_ref, pw_ref, f1w_ref, f2w_ref,
                     o_ref, *, num_heads, nr, nr_pad):
    f32, bf16 = jnp.float32, jnp.bfloat16
    C = x_ref.shape[-1]
    hd = C // num_heads
    tile_n = x_ref.shape[0]

    vec = vec_ref[...]
    n1g, n1b = vec[_N1G:_N1G + 1], vec[_N1B:_N1B + 1]
    qb = vec[_QB:_QB + 1]                      # scale already folded in
    pb = vec[_PB:_PB + 1]
    n2g, n2b = vec[_N2G:_N2G + 1], vec[_N2B:_N2B + 1]
    f2b = vec[_F2B:_F2B + 1]

    x = x_ref[...]                                             # (tile_n, C) f32
    xn = _layernorm(x, n1g, n1b)
    q = jnp.dot(xn.astype(bf16), qw_ref[...],
                preferred_element_type=f32) + qb               # scale folded into qw/qb

    kv = kv_ref[...]                                           # (Nr_pad, 2C) bf16

    if nr_pad > nr:
        col = jax.lax.broadcasted_iota(jnp.int32, (tile_n, nr_pad), 1)
        neg = jnp.where(col >= nr, jnp.float32(-1e30), jnp.float32(0.0))
    else:
        neg = None

    heads = []
    for h in range(num_heads):
        qh = q[:, h * hd:(h + 1) * hd].astype(bf16)            # (tile_n, hd)
        kh = kv[:, h * hd:(h + 1) * hd]                        # (Nr_pad, hd)
        vh = kv[:, C + h * hd:C + (h + 1) * hd]                # (Nr_pad, hd)
        logits = jax.lax.dot_general(
            qh, kh, (((1,), (1,)), ((), ())),
            preferred_element_type=f32)                        # (tile_n, Nr_pad)
        if neg is not None:
            logits = logits + neg                              # kill padded lanes
        logits = logits - jnp.max(logits, axis=-1, keepdims=True)
        p = jnp.exp(logits)
        denom = jnp.sum(p, axis=-1, keepdims=True)
        ph = jnp.dot(p.astype(bf16), vh, preferred_element_type=f32)
        # defer softmax normalization to the hd-wide output (EUP reciprocal)
        heads.append((ph * pl.reciprocal(denom, approx=True)).astype(bf16))

    attn = heads[0] if num_heads == 1 else jnp.concatenate(heads, axis=-1)
    ao = jnp.dot(attn, pw_ref[...], preferred_element_type=f32) + pb

    x1 = x + ao                                                # residual 1 (f32)

    xn2 = _layernorm(x1, n2g, n2b)
    hid = jnp.dot(xn2.astype(bf16), f1w_ref[...],
                  preferred_element_type=f32) + f1b_ref[...]
    hid = _gelu_exact(hid)
    mlp = jnp.dot(hid.astype(bf16), f2w_ref[...],
                  preferred_element_type=f32) + f2b

    o_ref[...] = x1 + mlp                                      # residual 2 (f32)


# --------------------------------- wrapper --------------------------------------

def _ln_host(v, g, b, eps=1e-5):
    mu = jnp.mean(v, axis=-1, keepdims=True)
    vc = v - mu
    var = jnp.mean(vc * vc, axis=-1, keepdims=True)
    return vc * jax.lax.rsqrt(var + eps) * g + b


def _const_spec(shape):
    """Constant-index BlockSpec, single-buffered (block never changes)."""
    nd = len(shape)
    idx = lambda *args: (0,) * nd
    try:
        return pl.BlockSpec(shape, idx, pipeline_mode=pl.Buffered(1))
    except TypeError:  # older jax without pipeline_mode kwarg
        return pl.BlockSpec(shape, idx)


def _main_footprint(tile_n, C, hidden, nr_pad):
    weights = 2 * (2 * C * C + 2 * C * hidden)            # qw, pw, f1w, f2w (bf16, 1-buffered)
    vecs = 4 * (7 * C + hidden)
    kv = 2 * (nr_pad * 2 * C) * 2                          # bf16, double-buffered (varies with b)
    io = 4 * tile_n * C * 2 * 2                            # x in + out, f32, double-buffered
    work = 4 * tile_n * (2 * nr_pad + 2 * hidden + 6 * C)  # logits/p, hid, misc f32 temps
    return weights + vecs + kv + io + work


def _kv_footprint(nr, ksr, C, nr_pad):
    return (2 * nr * ksr * 2                 # xg bf16, double-buffered
            + 2 * (ksr * C + 2 * C * C)      # srw + kvw bf16, single-buffered
            + 4 * (3 * C + 2 * C)            # vector params
            + 2 * nr_pad * 2 * C * 2         # out bf16, double-buffered
            + 4 * nr * (ksr + 4 * C))        # f32 working set
    

def _vmem_limit(footprint):
    # Derive the scoped-VMEM limit from the real footprint; stay well under
    # v7x's 64 MiB physical VMEM while allowing bigger tiles on v5e/v6e.
    return int(min(max(2 * footprint, 32 * 1024 * 1024), 44 * 1024 * 1024))


def _pick_tile_n(N, C, hidden, nr_pad, budget):
    cands = [d for d in range(N, 7, -1) if N % d == 0 and d % 8 == 0]
    if not cands:
        return N
    for t in cands:
        if _main_footprint(t, C, hidden, nr_pad) <= budget:
            return t
    return cands[-1]


def pvt_block_forward(x, params, H, W, num_heads, sr_ratio, tile_n=None,
                      vmem_budget_bytes=40 * 1024 * 1024):
    B, N, C = x.shape
    assert N == H * W
    hd = C // num_heads
    scale = hd ** (-0.5)
    hidden = params["fc1_w"].shape[0]
    f32, bf16 = jnp.float32, jnp.bfloat16

    # LayerNorm1(x): feeds only the k/v (spatial-reduction) path; the main kernel
    # recomputes LN1 per tile for the q path so x itself stays the residual stream.
    xn = _ln_host(x, params["n1_g"], params["n1_b"])

    if sr_ratio > 1:
        sr = sr_ratio
        Hs, Ws = H // sr, W // sr
        Nr = Hs * Ws
    else:
        Nr = N
    # pad the softmax / kv-row axis up to a multiple of 128 lanes (>= 128)
    Nr_pad = ((Nr + 127) // 128) * 128

    kvw = params["kv_w"].T.astype(bf16)                     # (C, 2C)
    kvb = params["kv_b"].reshape(1, 2 * C).astype(f32)

    # ---------------- stage 1: per-batch k/v (padded, bf16) ----------------
    if sr_ratio > 1:
        srsq = sr * sr
        Ksr = srsq * C
        # im2col gather of LN1(x): column order (kh, kw, cin) matches wflat below.
        xg = (xn.reshape(B, Hs, sr, Ws, sr, C)
                .transpose(0, 1, 3, 2, 4, 5)
                .reshape(B, Nr, Ksr)).astype(bf16)
        srw = jnp.transpose(params["sr_w"], (2, 3, 1, 0)).reshape(Ksr, C).astype(bf16)
        vec_sr = jnp.stack([params["sr_b"], params["srn_g"], params["srn_b"]],
                           axis=0).astype(f32)

        kv_kernel = functools.partial(_kv_sr_kernel, nr=Nr, nr_pad=Nr_pad)
        kv = pl.pallas_call(
            kv_kernel,
            out_shape=jax.ShapeDtypeStruct((B, Nr_pad, 2 * C), bf16),
            grid_spec=pltpu.PrefetchScalarGridSpec(
                num_scalar_prefetch=0,
                grid=(B,),
                in_specs=[
                    pl.BlockSpec((None, Nr, Ksr), lambda b: (b, 0, 0)),
                    _const_spec((3, C)),
                    _const_spec((1, 2 * C)),
                    _const_spec((Ksr, C)),
                    _const_spec((C, 2 * C)),
                ],
                out_specs=pl.BlockSpec((None, Nr_pad, 2 * C), lambda b: (b, 0, 0)),
            ),
            compiler_params=pltpu.CompilerParams(
                dimension_semantics=("parallel",),
                vmem_limit_bytes=_vmem_limit(_kv_footprint(Nr, Ksr, C, Nr_pad)),
            ),
        )(xg, vec_sr, kvb, srw, kvw)
    else:
        kv_kernel = functools.partial(_kv_plain_kernel, nr=Nr, nr_pad=Nr_pad)
        kv = pl.pallas_call(
            kv_kernel,
            out_shape=jax.ShapeDtypeStruct((B, Nr_pad, 2 * C), bf16),
            grid_spec=pltpu.PrefetchScalarGridSpec(
                num_scalar_prefetch=0,
                grid=(B,),
                in_specs=[
                    pl.BlockSpec((None, N, C), lambda b: (b, 0, 0)),
                    _const_spec((1, 2 * C)),
                    _const_spec((C, 2 * C)),
                ],
                out_specs=pl.BlockSpec((None, Nr_pad, 2 * C), lambda b: (b, 0, 0)),
            ),
            compiler_params=pltpu.CompilerParams(
                dimension_semantics=("parallel",),
                vmem_limit_bytes=_vmem_limit(_kv_footprint(Nr, C, C, Nr_pad)),
            ),
        )(xn.astype(bf16), kvb, kvw)

    # ---------------- stage 2: main fused block kernel ----------------
    if tile_n is None:
        tile_n = _pick_tile_n(N, C, hidden, Nr_pad, vmem_budget_bytes)
    assert N % tile_n == 0
    nt = N // tile_n

    vec_main = jnp.stack([
        params["n1_g"], params["n1_b"],        # _N1G, _N1B
        params["q_b"] * scale,                 # _QB  (attention scale folded in)
        params["proj_b"],                      # _PB
        params["n2_g"], params["n2_b"],        # _N2G, _N2B
        params["fc2_b"],                       # _F2B
    ], axis=0).astype(f32)
    f1b = params["fc1_b"].reshape(1, hidden).astype(f32)

    qw = (params["q_w"].T * scale).astype(bf16)   # scale folded into the weight
    pw = params["proj_w"].T.astype(bf16)
    f1w = params["fc1_w"].T.astype(bf16)
    f2w = params["fc2_w"].T.astype(bf16)

    footprint = _main_footprint(tile_n, C, hidden, Nr_pad)
    main_kernel = functools.partial(_pvt_main_kernel,
                                    num_heads=num_heads, nr=Nr, nr_pad=Nr_pad)

    return pl.pallas_call(
        main_kernel,
        out_shape=jax.ShapeDtypeStruct((B, N, C), f32),
        grid_spec=pltpu.PrefetchScalarGridSpec(
            num_scalar_prefetch=0,
            grid=(B, nt),
            in_specs=[
                pl.BlockSpec((None, tile_n, C), lambda b, t: (b, t, 0)),       # x
                pl.BlockSpec((None, Nr_pad, 2 * C), lambda b, t: (b, 0, 0)),   # k/v (per batch)
                _const_spec((7, C)),                                           # packed vectors
                _const_spec((1, hidden)),                                      # fc1 bias
                _const_spec((C, C)),                                           # q weight (scaled)
                _const_spec((C, C)),                                           # proj weight
                _const_spec((C, hidden)),                                      # fc1 weight
                _const_spec((hidden, C)),                                      # fc2 weight
            ],
            out_specs=pl.BlockSpec((None, tile_n, C), lambda b, t: (b, t, 0)),
        ),
        compiler_params=pltpu.CompilerParams(
            dimension_semantics=("parallel", "parallel"),
            vmem_limit_bytes=_vmem_limit(footprint),
        ),
    )(x, kv, vec_main, f1b, qw, pw, f1w, f2w)


# ------------------------------ pure-JAX reference -----------------------------

def pvt_block_reference(x, params, H, W, num_heads, sr_ratio):
    B, N, C = x.shape
    hd = C // num_heads
    scale = hd ** (-0.5)

    xn = _ln_host(x, params["n1_g"], params["n1_b"])
    q = xn @ params["q_w"].T + params["q_b"]

    if sr_ratio > 1:
        sr = sr_ratio
        Hs, Ws = H // sr, W // sr
        xg = xn.reshape(B, Hs, sr, Ws, sr, C).transpose(0, 1, 3, 2, 4, 5)
        xg = xg.reshape(B, Hs * Ws, sr * sr * C)
        wflat = jnp.transpose(params["sr_w"], (2, 3, 1, 0)).reshape(sr * sr * C, C)
        xr = xg @ wflat + params["sr_b"]
        xr = _ln_host(xr, params["srn_g"], params["srn_b"])
    else:
        xr = xn

    kv = xr @ params["kv_w"].T + params["kv_b"]
    Nr = kv.shape[1]
    k = kv[..., :C].reshape(B, Nr, num_heads, hd).transpose(0, 2, 1, 3)
    v = kv[..., C:].reshape(B, Nr, num_heads, hd).transpose(0, 2, 1, 3)
    qh = q.reshape(B, N, num_heads, hd).transpose(0, 2, 1, 3)

    attn = jnp.einsum("bhnd,bhmd->bhnm", qh, k) * scale
    attn = jax.nn.softmax(attn, axis=-1)
    ao = jnp.einsum("bhnm,bhmd->bhnd", attn, v).transpose(0, 2, 1, 3).reshape(B, N, C)
    ao = ao @ params["proj_w"].T + params["proj_b"]

    x1 = x + ao
    xn2 = _ln_host(x1, params["n2_g"], params["n2_b"])
    h1 = jax.nn.gelu(xn2 @ params["fc1_w"].T + params["fc1_b"], approximate=False)
    return x1 + (h1 @ params["fc2_w"].T + params["fc2_b"])


# ------------------------------------ main ------------------------------------

def _init_params(key, dim, num_heads, mlp_ratio, sr_ratio):
    hidden = int(dim * mlp_ratio)
    keys = jax.random.split(key, 8)
    std = 0.02
    return {
        "n1_g": jnp.ones((dim,), jnp.float32),
        "n1_b": jnp.zeros((dim,), jnp.float32),
        "q_w": std * jax.random.normal(keys[0], (dim, dim), jnp.float32),
        "q_b": jnp.zeros((dim,), jnp.float32),
        "kv_w": std * jax.random.normal(keys[1], (2 * dim, dim), jnp.float32),
        "kv_b": jnp.zeros((2 * dim,), jnp.float32),
        "sr_w": std * jax.random.normal(keys[2], (dim, dim, sr_ratio, sr_ratio), jnp.float32),
        "sr_b": jnp.zeros((dim,), jnp.float32),
        "srn_g": jnp.ones((dim,), jnp.float32),
        "srn_b": jnp.zeros((dim,), jnp.float32),
        "proj_w": std * jax.random.normal(keys[3], (dim, dim), jnp.float32),
        "proj_b": jnp.zeros((dim,), jnp.float32),
        "n2_g": jnp.ones((dim,), jnp.float32),
        "n2_b": jnp.zeros((dim,), jnp.float32),
        "fc1_w": std * jax.random.normal(keys[4], (hidden, dim), jnp.float32),
        "fc1_b": jnp.zeros((hidden,), jnp.float32),
        "fc2_w": std * jax.random.normal(keys[5], (dim, hidden), jnp.float32),
        "fc2_b": jnp.zeros((dim,), jnp.float32),
    }


if __name__ == "__main__":
    # TODO(synk): Dropout / DropPath are identity here (eval-mode inference semantics).
    master = jax.random.PRNGKey(0)

    def run_case(case_key, B, H, W, dim, num_heads, sr_ratio, mlp_ratio, tile_n):
        N = H * W
        kx, kp = jax.random.split(case_key)
        x = jax.random.normal(kx, (B, N, dim), jnp.float32)
        params = _init_params(kp, dim, num_heads, mlp_ratio, sr_ratio)
        out = jax.block_until_ready(
            pvt_block_forward(x, params, H, W, num_heads, sr_ratio, tile_n=tile_n))
        ref = jax.block_until_ready(
            pvt_block_reference(x, params, H, W, num_heads, sr_ratio))
        err = float(jnp.max(jnp.abs(out - ref)))
        # bf16 matmul path + approx reciprocal vs f32 reference -> loose tolerance
        assert err < 2e-2, f"mismatch vs reference: max abs err = {err}"

    k1, k2 = jax.random.split(master)
    # sr_ratio=2, explicit tile_n=16 -> exercises the multi-tile grid + Nr padding/mask
    run_case(k1, B=2, H=8, W=8, dim=32, num_heads=2, sr_ratio=2, mlp_ratio=4.0, tile_n=16)
    # sr_ratio=1, auto tile pick -> exercises the plain kv path
    run_case(k2, B=2, H=4, W=4, dim=32, num_heads=2, sr_ratio=1, mlp_ratio=4.0, tile_n=None)

    print("KERNEL_OK")
</pallas_src>

<mosaic_0001>
module attributes {stable_mosaic.version = 11 : i64} {
  func.func @_kv_sr_kernel(%arg0: i32, %arg1: memref<1x16x128xbf16, #tpu.memory_space<vmem>>, %arg2: memref<3x32xf32, #tpu.memory_space<vmem>>, %arg3: memref<1x64xf32, #tpu.memory_space<vmem>>, %arg4: memref<128x32xbf16, #tpu.memory_space<vmem>>, %arg5: memref<32x64xbf16, #tpu.memory_space<vmem>>, %arg6: memref<1x128x64xbf16, #tpu.memory_space<vmem>>) attributes {dimension_semantics = [#tpu.dimension_semantics<parallel>], iteration_bounds = array<i64: 2>, scalar_prefetch = 0 : i64, scratch_operands = 0 : i64, tpu.core_type = #tpu.core_type<tc>, window_params = [{transform_indices = @transform_0, window_bounds = array<i64: 1, 16, 128>}, {pipeline_mode = #tpu.pipeline_mode<synchronous>, transform_indices = @transform_1, window_bounds = array<i64: 3, 32>}, {pipeline_mode = #tpu.pipeline_mode<synchronous>, transform_indices = @transform_2, window_bounds = array<i64: 1, 64>}, {pipeline_mode = #tpu.pipeline_mode<synchronous>, transform_indices = @transform_3, window_bounds = array<i64: 128, 32>}, {pipeline_mode = #tpu.pipeline_mode<synchronous>, transform_indices = @transform_4, window_bounds = array<i64: 32, 64>}, {transform_indices = @transform_5, window_bounds = array<i64: 1, 128, 64>}]} {
    %c0 = arith.constant 0 : index
    %c0_0 = arith.constant 0 : index
    %0 = vector.load %arg2[%c0, %c0_0] : memref<3x32xf32, #tpu.memory_space<vmem>>, vector<3x32xf32>
    %1 = vector.extract_strided_slice %0 {offsets = [0, 0], sizes = [1, 32], strides = [1, 1]} : vector<3x32xf32> to vector<1x32xf32>
    %2 = vector.extract_strided_slice %0 {offsets = [1, 0], sizes = [1, 32], strides = [1, 1]} : vector<3x32xf32> to vector<1x32xf32>
    %3 = vector.extract_strided_slice %0 {offsets = [2, 0], sizes = [1, 32], strides = [1, 1]} : vector<3x32xf32> to vector<1x32xf32>
    %c0_1 = arith.constant 0 : index
    %c0_2 = arith.constant 0 : index
    %c0_3 = arith.constant 0 : index
    %4 = vector.load %arg1[%c0_1, %c0_2, %c0_3] : memref<1x16x128xbf16, #tpu.memory_space<vmem>>, vector<1x16x128xbf16>
    %5 = vector.shape_cast %4 : vector<1x16x128xbf16> to vector<16x128xbf16>
    %c0_4 = arith.constant 0 : index
    %c0_5 = arith.constant 0 : index
    %6 = vector.load %arg4[%c0_4, %c0_5] : memref<128x32xbf16, #tpu.memory_space<vmem>>, vector<128x32xbf16>
    %cst = arith.constant dense<0.000000e+00> : vector<16x32xf32>
    %7 = tpu.matmul %5, %6, %cst {dimension_numbers = #tpu.dot_dimension_numbers<[1], [0], [0], [1], [0, 0, 1, 1], [], []>} : vector<16x128xbf16>, vector<128x32xbf16>, vector<16x32xf32> -> vector<16x32xf32>
    %8 = vector.broadcast %1 : vector<1x32xf32> to vector<16x32xf32>
    %9 = arith.addf %7, %8 : vector<16x32xf32>
    %cst_6 = arith.constant dense<0.000000e+00> : vector<16xf32>
    %10 = vector.multi_reduction <add>, %9, %cst_6 [1] : vector<16x32xf32> to vector<16xf32>
    %11 = vector.shape_cast %10 : vector<16xf32> to vector<16x1xf32>
    %cst_7 = arith.constant 3.200000e+01 : f32
    %12 = vector.broadcast %cst_7 : f32 to vector<16x1xf32>
    %13 = arith.divf %11, %12 : vector<16x1xf32>
    %14 = vector.broadcast %13 : vector<16x1xf32> to vector<16x32xf32>
    %15 = arith.subf %9, %14 : vector<16x32xf32>
    %16 = arith.mulf %15, %15 : vector<16x32xf32>
    %cst_8 = arith.constant dense<0.000000e+00> : vector<16xf32>
    %17 = vector.multi_reduction <add>, %16, %cst_8 [1] : vector<16x32xf32> to vector<16xf32>
    %18 = vector.shape_cast %17 : vector<16xf32> to vector<16x1xf32>
    %cst_9 = arith.constant 3.200000e+01 : f32
    %19 = vector.broadcast %cst_9 : f32 to vector<16x1xf32>
    %20 = arith.divf %18, %19 : vector<16x1xf32>
    %cst_10 = arith.constant 9.99999974E-6 : f32
    %21 = vector.broadcast %cst_10 : f32 to vector<16x1xf32>
    %22 = arith.addf %20, %21 : vector<16x1xf32>
    %23 = math.rsqrt %22 : vector<16x1xf32>
    %24 = vector.broadcast %23 : vector<16x1xf32> to vector<16x32xf32>
    %25 = arith.mulf %15, %24 : vector<16x32xf32>
    %26 = vector.broadcast %2 : vector<1x32xf32> to vector<16x32xf32>
    %27 = arith.mulf %25, %26 : vector<16x32xf32>
    %28 = vector.broadcast %3 : vector<1x32xf32> to vector<16x32xf32>
    %29 = arith.addf %27, %28 : vector<16x32xf32>
    %30 = arith.truncf %29 : vector<16x32xf32> to vector<16x32xbf16>
    %c0_11 = arith.constant 0 : index
    %c0_12 = arith.constant 0 : index
    %31 = vector.load %arg5[%c0_11, %c0_12] : memref<32x64xbf16, #tpu.memory_space<vmem>>, vector<32x64xbf16>
    %cst_13 = arith.constant dense<0.000000e+00> : vector<16x64xf32>
    %32 = tpu.matmul %30, %31, %cst_13 {dimension_numbers = #tpu.dot_dimension_numbers<[1], [0], [0], [1], [0, 0, 1, 1], [], []>} : vector<16x32xbf16>, vector<32x64xbf16>, vector<16x64xf32> -> vector<16x64xf32>
    %c0_14 = arith.constant 0 : index
    %c0_15 = arith.constant 0 : index
    %33 = vector.load %arg3[%c0_14, %c0_15] : memref<1x64xf32, #tpu.memory_space<vmem>>, vector<1x64xf32>
    %34 = vector.broadcast %33 : vector<1x64xf32> to vector<16x64xf32>
    %35 = arith.addf %32, %34 : vector<16x64xf32>
    %cst_16 = arith.constant 0.000000e+00 : bf16
    %36 = vector.broadcast %cst_16 : bf16 to vector<128x64xbf16>
    %c0_17 = arith.constant 0 : index
    %c0_18 = arith.constant 0 : index
    %c0_19 = arith.constant 0 : index
    %37 = vector.load %arg6[%c0_17, %c0_18, %c0_19] : memref<1x128x64xbf16, #tpu.memory_space<vmem>>, vector<1x128x64xbf16>
    %38 = vector.shape_cast %37 : vector<1x128x64xbf16> to vector<128x64xbf16>
    %39 = vector.shape_cast %36 : vector<128x64xbf16> to vector<1x128x64xbf16>
    tpu.vector_store %arg6[%c0_17, %c0_18, %c0_19], %39 {strides = array<i32>} : memref<1x128x64xbf16, #tpu.memory_space<vmem>>, vector<1x128x64xbf16>,
    %40 = arith.truncf %35 : vector<16x64xf32> to vector<16x64xbf16>
    %c0_20 = arith.constant 0 : index
    %c0_21 = arith.constant 0 : index
    %c0_22 = arith.constant 0 : index
    %41 = vector.load %arg6[%c0_20, %c0_21, %c0_22] : memref<1x128x64xbf16, #tpu.memory_space<vmem>>, vector<1x16x64xbf16>
    %42 = vector.shape_cast %41 : vector<1x16x64xbf16> to vector<16x64xbf16>
    %43 = vector.shape_cast %40 : vector<16x64xbf16> to vector<1x16x64xbf16>
    tpu.vector_store %arg6[%c0_20, %c0_21, %c0_22], %43 {strides = array<i32>} : memref<1x128x64xbf16, #tpu.memory_space<vmem>>, vector<1x16x64xbf16>,
    return
  }
  func.func @transform_0(%arg0: i32) -> (i32, i32, i32) {
    %c0_i32 = arith.constant 0 : i32
    %c0_i32_0 = arith.constant 0 : i32
    %c0_i32_1 = arith.constant 0 : i32
    return %arg0, %c0_i32, %c0_i32_0 : i32, i32, i32
  }
  func.func @transform_1(%arg0: i32) -> (i32, i32) {
    %c0_i32 = arith.constant 0 : i32
    %c0_i32_0 = arith.constant 0 : i32
    %c0_i32_1 = arith.constant 0 : i32
    return %c0_i32, %c0_i32_0 : i32, i32
  }
  func.func @transform_2(%arg0: i32) -> (i32, i32) {
    %c0_i32 = arith.constant 0 : i32
    %c0_i32_0 = arith.constant 0 : i32
    %c0_i32_1 = arith.constant 0 : i32
    return %c0_i32, %c0_i32_0 : i32, i32
  }
  func.func @transform_3(%arg0: i32) -> (i32, i32) {
    %c0_i32 = arith.constant 0 : i32
    %c0_i32_0 = arith.constant 0 : i32
    %c0_i32_1 = arith.constant 0 : i32
    return %c0_i32, %c0_i32_0 : i32, i32
  }
  func.func @transform_4(%arg0: i32) -> (i32, i32) {
    %c0_i32 = arith.constant 0 : i32
    %c0_i32_0 = arith.constant 0 : i32
    %c0_i32_1 = arith.constant 0 : i32
    return %c0_i32, %c0_i32_0 : i32, i32
  }
  func.func @transform_5(%arg0: i32) -> (i32, i32, i32) {
    %c0_i32 = arith.constant 0 : i32
    %c0_i32_0 = arith.constant 0 : i32
    %c0_i32_1 = arith.constant 0 : i32
    return %arg0, %c0_i32, %c0_i32_0 : i32, i32, i32
  }
}

</mosaic_0001>

<llo_original>
// kernel: tpu_custom_call.1
$region0: #{tpu_custom_call.1}
  #allocation0 [shape = 'u32[]', space=smem, size = 0x4, offset = 0x4, fixed_abs, tag = 'smem constant byte address 0x4 - core index']
  #allocation1 [shape = 'u32[144,128]{1,0:T(1,128)}', space=vmem, size = 0x12000, scoped, tag = 'internal scratch']
  %s0 = inlined_call_operand.vmem [shape: bf16[2,16,128], index: 0, kind: input, shape index: {}]
  %s1 = inlined_call_operand.vmem [shape: f32[3,32], index: 1, kind: input, shape index: {}]
  %s2 = inlined_call_operand.vmem [shape: f32[1,64], index: 2, kind: input, shape index: {}]
  %s3 = inlined_call_operand.vmem [shape: bf16[128,32], index: 3, kind: input, shape index: {}]
  %s4 = inlined_call_operand.vmem [shape: bf16[32,64], index: 4, kind: input, shape index: {}]
  %s5 = inlined_call_operand.vmem [shape: bf16[2,128,64], index: 5, kind: output, shape index: {}]
  %s6 = sld [smem:[#allocation0]]
  $region53: #{tpu_custom_call.1} parent=0
    _
  %s8 = ssub.s32 1, %s6
  %s9 = scalar_select 0, %s8, %s6
  loop: start=0, step=1, limit=4
  $region2: #{tpu_custom_call.1} parent=0 // loop_pre_header
    _
  $region3: #{tpu_custom_call.1} parent=0 // loop_header
    %s11 = sphi 0, %s15
    %p12 = scmp.ge.s32.totalorder %s11, 4
    %s21 = sphi 0, %s23
    %s24 = sphi 0, %s21
    %s25 = sphi 0, %s24
    %s41 = sphi 0, %s25
    %s45 = sphi 0, %s45
    %s47 = sphi 0, %s45
    %s48 = sphi 0, %s47
    %s62 = sphi 0, %s48
    %s66 = sphi 0, %s66
    %s68 = sphi 0, %s66
    %s69 = sphi 0, %s68
    %s83 = sphi 0, %s69
    %s87 = sphi 0, %s87
    %s89 = sphi 0, %s87
    %s90 = sphi 0, %s89
    %s104 = sphi 0, %s90
    %s108 = sphi 0, %s108
    %s110 = sphi 0, %s108
    %s111 = sphi 0, %s110
    %s125 = sphi 0, %s111
    %s131 = sphi 0, %s133
    %s134 = sphi 0, %s131
    %s135 = sphi 0, %s134
    %s151 = sphi 0, %s135
  $region4: #{tpu_custom_call.1} parent=0 // loop_header_branch
    %14 = sbr.rel (%p12) target = $region8
  $region5: #{tpu_custom_call.1} parent=0 // loop_body
    %s16 = ssub.s32 %s11, 1
    %s17 = ssub.s32 %s11, 2
    %s18 = sadd.s32 %s11, 1
    %s19 = ssub.s32 %s11, %s18
    %p20 = scmp.eq.s32.totalorder %s19, 0
    %s22 = sadd.s32 %s21, 1
    %s23 = scalar_select %p20, %s21, %s22
    %p26 = pneg %p20
    %p27 = scmp.eq.s32.totalorder %s11, 1
    %p28 = por %p26, %p27
    %p29 = scmp.ne.s32.totalorder %s21, %s24
    %p30 = scmp.eq.s32.totalorder %s11, 0
    %p31 = por %p29, %p30
    %p32 = scmp.ne.s32.totalorder %s21, %s24
    %p33 = scmp.eq.s32.totalorder %s16, 1
    %p34 = por %p32, %p33
    %p35 = scmp.ne.s32.totalorder %s24, %s25
    %p36 = scmp.eq.s32.totalorder %s16, 0
    %p37 = por %p35, %p36
    %p38 = scmp.ne.s32.totalorder %s24, %s25
    %p39 = scmp.eq.s32.totalorder %s17, 1
    %p40 = por %p38, %p39
    %p42 = scmp.ne.s32.totalorder %s25, %s41
    %p43 = scmp.eq.s32.totalorder %s17, 0
    %p44 = por %p42, %p43
    %s46 = sadd.s32 %s45, 1
    %p49 = scmp.eq.s32.totalorder %s11, 1
    %p50 = scmp.ne.s32.totalorder %s45, %s47
    %p51 = scmp.eq.s32.totalorder %s11, 0
    %p52 = por %p50, %p51
    %p53 = scmp.ne.s32.totalorder %s45, %s47
    %p54 = scmp.eq.s32.totalorder %s16, 1
    %p55 = por %p53, %p54
    %p56 = scmp.ne.s32.totalorder %s47, %s48
    %p57 = scmp.eq.s32.totalorder %s16, 0
    %p58 = por %p56, %p57
    %p59 = scmp.ne.s32.totalorder %s47, %s48
    %p60 = scmp.eq.s32.totalorder %s17, 1
    %p61 = por %p59, %p60
    %p63 = scmp.ne.s32.totalorder %s48, %s62
    %p64 = scmp.eq.s32.totalorder %s17, 0
    %p65 = por %p63, %p64
    %s67 = sadd.s32 %s66, 1
    %p70 = scmp.eq.s32.totalorder %s11, 1
    %p71 = scmp.ne.s32.totalorder %s66, %s68
    %p72 = scmp.eq.s32.totalorder %s11, 0
    %p73 = por %p71, %p72
    %p74 = scmp.ne.s32.totalorder %s66, %s68
    %p75 = scmp.eq.s32.totalorder %s16, 1
    %p76 = por %p74, %p75
    %p77 = scmp.ne.s32.totalorder %s68, %s69
    %p78 = scmp.eq.s32.totalorder %s16, 0
    %p79 = por %p77, %p78
    %p80 = scmp.ne.s32.totalorder %s68, %s69
    %p81 = scmp.eq.s32.totalorder %s17, 1
    %p82 = por %p80, %p81
    %p84 = scmp.ne.s32.totalorder %s69, %s83
    %p85 = scmp.eq.s32.totalorder %s17, 0
    %p86 = por %p84, %p85
    %s88 = sadd.s32 %s87, 1
    %p91 = scmp.eq.s32.totalorder %s11, 1
    %p92 = scmp.ne.s32.totalorder %s87, %s89
    %p93 = scmp.eq.s32.totalorder %s11, 0
    %p94 = por %p92, %p93
    %p95 = scmp.ne.s32.totalorder %s87, %s89
    %p96 = scmp.eq.s32.totalorder %s16, 1
    %p97 = por %p95, %p96
    %p98 = scmp.ne.s32.totalorder %s89, %s90
    %p99 = scmp.eq.s32.totalorder %s16, 0
    %p100 = por %p98, %p99
    %p101 = scmp.ne.s32.totalorder %s89, %s90
    %p102 = scmp.eq.s32.totalorder %s17, 1
    %p103 = por %p101, %p102
    %p105 = scmp.ne.s32.totalorder %s90, %s104
    %p106 = scmp.eq.s32.totalorder %s17, 0
    %p107 = por %p105, %p106
    %s109 = sadd.s32 %s108, 1
    %p112 = scmp.eq.s32.totalorder %s11, 1
    %p113 = scmp.ne.s32.totalorder %s108, %s110
    %p114 = scmp.eq.s32.totalorder %s11, 0
    %p115 = por %p113, %p114
    %p116 = scmp.ne.s32.totalorder %s108, %s110
    %p117 = scmp.eq.s32.totalorder %s16, 1
    %p118 = por %p116, %p117
    %p119 = scmp.ne.s32.totalorder %s110, %s111
    %p120 = scmp.eq.s32.totalorder %s16, 0
    %p121 = por %p119, %p120
    %p122 = scmp.ne.s32.totalorder %s110, %s111
    %p123 = scmp.eq.s32.totalorder %s17, 1
    %p124 = por %p122, %p123
    %p126 = scmp.ne.s32.totalorder %s111, %s125
    %p127 = scmp.eq.s32.totalorder %s17, 0
    %p128 = por %p126, %p127
    %s129 = ssub.s32 %s11, %s18
    %p130 = scmp.eq.s32.totalorder %s129, 0
    %s132 = sadd.s32 %s131, 1
    %s133 = scalar_select %p130, %s131, %s132
    %p136 = pneg %p130
    %p137 = scmp.eq.s32.totalorder %s11, 1
    %p138 = por %p136, %p137
    %p139 = scmp.ne.s32.totalorder %s131, %s134
    %p140 = scmp.eq.s32.totalorder %s11, 0
    %p141 = por %p139, %p140
    %p142 = scmp.ne.s32.totalorder %s131, %s134
    %p143 = scmp.eq.s32.totalorder %s16, 1
    %p144 = por %p142, %p143
    %p145 = scmp.ne.s32.totalorder %s134, %s135
    %p146 = scmp.eq.s32.totalorder %s16, 0
    %p147 = por %p145, %p146
    %p148 = scmp.ne.s32.totalorder %s134, %s135
    %p149 = scmp.eq.s32.totalorder %s17, 1
    %p150 = por %p148, %p149
    %p152 = scmp.ne.s32.totalorder %s135, %s151
    %p153 = scmp.eq.s32.totalorder %s17, 0
    %p154 = por %p152, %p153
    %p155 = scmp.le.s32.totalorder 1, %s11
    %p156 = scmp.lt.s32.totalorder %s11, 3
    %p157 = pnand %p155, %p156
    %p158 = pneg %p157
    // Predicated region
    $region9: #{tpu_custom_call.1} parent=5 // pred_check
      _
    $region10: #{tpu_custom_call.1} parent=5 // pred_check_branch
      %160 = sbr.rel (%p157) target = $region12
    $region11: #{tpu_custom_call.1} parent=5 // pred_region
      %s161 = ssub.s32 %s11, 1
      // Predicated region
      $region13: #{tpu_custom_call.1} parent=11 // pred_check
        %p162 = pneg %p58
      $region14: #{tpu_custom_call.1} parent=11 // pred_check_branch
        %164 = sbr.rel (%p162) target = $region16
      $region15: #{tpu_custom_call.1} parent=11 // pred_region
        _
      $region16: #{tpu_custom_call.1} parent=11 // pred_fallthru
        _
      // Predicated region
      $region17: #{tpu_custom_call.1} parent=11 // pred_check
        %p165 = pneg %p79
      $region18: #{tpu_custom_call.1} parent=11 // pred_check_branch
        %167 = sbr.rel (%p165) target = $region20
      $region19: #{tpu_custom_call.1} parent=11 // pred_region
        _
      $region20: #{tpu_custom_call.1} parent=11 // pred_fallthru
        _
      // Predicated region
      $region21: #{tpu_custom_call.1} parent=11 // pred_check
        %p168 = pneg %p100
      $region22: #{tpu_custom_call.1} parent=11 // pred_check_branch
        %170 = sbr.rel (%p168) target = $region24
      $region23: #{tpu_custom_call.1} parent=11 // pred_region
        _
      $region24: #{tpu_custom_call.1} parent=11 // pred_fallthru
        _
      // Predicated region
      $region25: #{tpu_custom_call.1} parent=11 // pred_check
        %p171 = pneg %p121
      $region26: #{tpu_custom_call.1} parent=11 // pred_check_branch
        %173 = sbr.rel (%p171) target = $region28
      $region27: #{tpu_custom_call.1} parent=11 // pred_region
        _
      $region28: #{tpu_custom_call.1} parent=11 // pred_fallthru
        _
    $region12: #{tpu_custom_call.1} parent=5 // pred_fallthru
      _
    %p174 = scmp.lt.s32.totalorder %s11, 2
    // Predicated region
    $region29: #{tpu_custom_call.1} parent=5 // pred_check
      %p175 = pneg %p174
    $region30: #{tpu_custom_call.1} parent=5 // pred_check_branch
      %177 = sbr.rel (%p175) target = $region32
    $region31: #{tpu_custom_call.1} parent=5 // pred_region
      // Predicated region
      $region33: #{tpu_custom_call.1} parent=31 // pred_check
        %p178 = pneg %p31
      $region34: #{tpu_custom_call.1} parent=31 // pred_check_branch
        %180 = sbr.rel (%p178) target = $region36
      $region35: #{tpu_custom_call.1} parent=31 // pred_region
        %p181 = scmp.lt.s32.totalorder %s11, 1
        %s182 = scalar_select %p181, %s11, 1
        %s183 = smul.addr %s182, 2
        %s184 = smul.addr %s183, 4
        %s185 = scalar_lea.vmem %s0, %s184
      $region36: #{tpu_custom_call.1} parent=31 // pred_fallthru
        _
    $region32: #{tpu_custom_call.1} parent=5 // pred_fallthru
      _
    %p186 = scmp.le.s32.totalorder 1, %s11
    %p187 = scmp.lt.s32.totalorder %s11, 3
    %p188 = pnand %p186, %p187
    %p189 = pneg %p188
    // Predicated region
    $region37: #{tpu_custom_call.1} parent=5 // pred_check
      _
    $region38: #{tpu_custom_call.1} parent=5 // pred_check_branch
      %191 = sbr.rel (%p188) target = $region40
    $region39: #{tpu_custom_call.1} parent=5 // pred_region
      %s192 = ssub.s32 %s11, 1
      %p193 = scmp.lt.s32.totalorder %s16, 1
      %s194 = scalar_select %p193, %s16, 1
      %s195 = smul.addr %s194, 2
      %s196 = smul.addr %s195, 4
      %s197 = scalar_lea.vmem %s0, %s196
      %p198 = pneg %p37
      %p199 = pneg %p34
      %p200 = pneg %p58
      %p201 = pneg %p55
      %p202 = pneg %p79
      %p203 = pneg %p76
      %p204 = pneg %p100
      %p205 = pneg %p97
      %p206 = pneg %p121
      %p207 = pneg %p118
      %p208 = pneg %p147
      %p209 = pneg %p144
      %p210 = scmp.lt.s32.totalorder %s16, 1
      %s211 = scalar_select %p210, %s16, 1
      %s212 = smul.addr %s211, 16
      %s213 = smul.addr %s212, 4
      %s214 = scalar_lea.vmem %s5, %s213
      %p215 = scmp.lt.s32.totalorder %s16, 1
      %s216 = scalar_select %p215, %s16, 1
      %s217 = smul.addr %s216, 2
      %s218 = smul.addr %s217, 4
      %s219 = scalar_lea.vmem %s0, %s218
      %p220 = scmp.lt.s32.totalorder %s16, 1
      %s221 = scalar_select %p220, %s16, 1
      %s222 = smul.addr %s221, 16
      %s223 = smul.addr %s222, 4
      %s224 = scalar_lea.vmem %s5, %s223
      %v226 = vld [vmem:[%s1] sm:$0x7]
      %v227 = vld [vmem:[%s219] sm:$0xf]
      %v228 = vld [vmem:[%s219 + $0x4] sm:$0xf]
      %v229 = vld [vmem:[%s3] sm:$0xf]
      %v230 = vld [vmem:[%s3 + $0x4] sm:$0xf]
      %v231 = vld [vmem:[%s3 + $0x8] sm:$0xf]
      %v232 = vld [vmem:[%s3 + $0xc] sm:$0xf]
      %v233 = vld [vmem:[%s3 + $0x10] sm:$0xf]
      %v234 = vld [vmem:[%s3 + $0x14] sm:$0xf]
      %v235 = vld [vmem:[%s3 + $0x18] sm:$0xf]
      %v236 = vld [vmem:[%s3 + $0x1c] sm:$0xf]
      %v237 = vld [vmem:[%s3 + $0x20] sm:$0xf]
      %v238 = vld [vmem:[%s3 + $0x24] sm:$0xf]
      %v239 = vld [vmem:[%s3 + $0x28] sm:$0xf]
      %v240 = vld [vmem:[%s3 + $0x2c] sm:$0xf]
      %v241 = vld [vmem:[%s3 + $0x30] sm:$0xf]
      %v242 = vld [vmem:[%s3 + $0x34] sm:$0xf]
      %v243 = vld [vmem:[%s3 + $0x38] sm:$0xf]
      %v244 = vld [vmem:[%s3 + $0x3c] sm:$0xf]
      %v245 = vlaneseq
      %v246 = vshrl.u32 %v245, 7
      %v247 = vsub.s32 0, %v246
      %v248 = vrot.slane %v226, %v247
      %v251 = vunpack.c.l.b16 %v227
      %v252 = vunpack.c.l.b16 %v228
      %v253 = vpack.c.b16 %v252, %v251
      %v271 = vunpack.c.l.b16 %v229
      %v272 = vunpack.c.l.b16 %v230
      %v273 = vunpack.c.l.b16 %v231
      %v274 = vunpack.c.l.b16 %v232
      %v275 = vunpack.c.l.b16 %v233
      %v276 = vunpack.c.l.b16 %v234
      %v277 = vunpack.c.l.b16 %v235
      %v278 = vunpack.c.l.b16 %v236
      %v279 = vunpack.c.l.b16 %v237
      %v280 = vunpack.c.l.b16 %v238
      %v281 = vunpack.c.l.b16 %v239
      %v282 = vunpack.c.l.b16 %v240
      %v283 = vunpack.c.l.b16 %v241
      %v284 = vunpack.c.l.b16 %v242
      %v285 = vunpack.c.l.b16 %v243
      %v286 = vunpack.c.l.b16 %v244
      %v287 = vpack.c.b16 %v272, %v271
      %v288 = vpack.c.b16 %v274, %v273
      %v289 = vpack.c.b16 %v276, %v275
      %v290 = vpack.c.b16 %v278, %v277
      %v291 = vpack.c.b16 %v280, %v279
      %v292 = vpack.c.b16 %v282, %v281
      %v293 = vpack.c.b16 %v284, %v283
      %v294 = vpack.c.b16 %v286, %v285
      %303 = vmatprep.subr.bf16.mxu0 0
      %304 = vmatpush1.bf16.msra.mxu0 %v287
      %305 = vmatprep.subr.bf16.mxu0 0
      %306 = vmatpush1.bf16.msra.mxu0 %v288
      %307 = vmatprep.subr.bf16.mxu0 0
      %308 = vmatpush1.bf16.msra.mxu0 %v289
      %309 = vmatprep.subr.bf16.mxu0 0
      %310 = vmatpush1.bf16.msra.mxu0 %v290
      %311 = vmatprep.subr.bf16.mxu0 0
      %312 = vmatpush1.bf16.msra.mxu0 %v291
      %313 = vmatprep.subr.bf16.mxu0 0
      %314 = vmatpush1.bf16.msra.mxu0 %v292
      %315 = vmatprep.subr.bf16.mxu0 0
      %316 = vmatpush1.bf16.msra.mxu0 %v293
      %317 = vmatprep.subr.bf16.mxu0 0
      %318 = vmatpush1.bf16.msra.mxu0 %v294
      %319 = vmatprep.subr.bf16.mxu0 0
      %320 = vmatpush1.bf16.msra.mxu0 0
      %321 = vmatprep.subr.bf16.mxu0 0
      %322 = vmatpush1.bf16.msra.mxu0 0
      %323 = vmatprep.subr.bf16.mxu0 0
      %324 = vmatpush1.bf16.msra.mxu0 0
      %325 = vmatprep.subr.bf16.mxu0 0
      %326 = vmatpush1.bf16.msra.mxu0 0
      %327 = vmatprep.subr.bf16.mxu0 0
      %328 = vmatpush1.bf16.msra.mxu0 0
      %329 = vmatprep.subr.bf16.mxu0 0
      %330 = vmatpush1.bf16.msra.mxu0 0
      %331 = vmatprep.subr.bf16.mxu0 0
      %332 = vmatpush1.bf16.msra.mxu0 0
      %333 = vmatprep.subr.bf16.mxu0 0
      %334 = vmatpush1.bf16.msra.mxu0 0
      %335 = vmatprep.mubr.bf16.mxu0 0
      %336 = vmatmul.mubr.bf16.gmra.mrb[0].mxu0 %v253
      %v337 = vpop.f32.mrb[0].mxu0
      %v338 = vadd.f32 %v248, %v337
      %v339 = vpop.f32.mrb[0].mxu0
      %v340 = vpop.f32.mrb[0].mxu0
      %v341 = vadd.f32 %v248, %v340
      %v342 = vpop.f32.mrb[0].mxu0
      %343 = vdwg.mxu0
      %vm344 = vcmask 261120
      %v345 = vsel %vm344, %v338, 0.0
      %346 = vadd.xlane.f32.xlu0 %v345
      %v347 = vpop.xlane.xlu0 %346
      %v348 = vsel %vm344, %v341, 0.0
      %349 = vadd.xlane.f32.xlu0 %v348
      %v350 = vpop.xlane.xlu0 %349
      %v351 = vrcp.pop 32.0
      %v352 = vmul.f32 %v347, %v351
      %v353 = vmul.f32 %v350, %v351
      %v354 = vsub.f32 %v338, %v352
      %v355 = vsub.f32 %v341, %v353
      %v356 = vmul.f32 %v354, %v354
      %v357 = vmul.f32 %v355, %v355
      %v358 = vsel %vm344, %v356, 0.0
      %359 = vadd.xlane.f32.xlu0 %v358
      %v360 = vpop.xlane.xlu0 %359
      %v361 = vsel %vm344, %v357, 0.0
      %362 = vadd.xlane.f32.xlu0 %v361
      %v363 = vpop.xlane.xlu0 %362
      %v364 = vmul.f32 %v360, %v351
      %v365 = vmul.f32 %v363, %v351
      %v366 = vadd.f32 %v364, 1e-05
      %v367 = vadd.f32 %v365, 1e-05
      %v368 = vrsqrt.pop %v366
      %v369 = vrsqrt.pop %v367
      %v370 = vmul.f32 %v354, %v368
      %v371 = vmul.f32 %v355, %v369
      %v372 = vlaneseq
      %v373 = vshrl.u32 %v372, 7
      %v374 = vsub.s32 1, %v373
      %v375 = vrot.slane %v226, %v374
      %v376 = vmul.f32 %v370, %v375
      %v377 = vmul.f32 %v371, %v375
      %v378 = vlaneseq
      %v379 = vshrl.u32 %v378, 7
      %v380 = vsub.s32 2, %v379
      %v381 = vrot.slane %v226, %v380
      %v382 = vadd.f32 %v376, %v381
      %v383 = vadd.f32 %v377, %v381
      %v384 = vpack.c.bf16 %v383, %v382
      %v385 = vld [vmem:[%s4] sm:$0xf]
      %v386 = vld [vmem:[%s4 + $0x4] sm:$0xf]
      %v387 = vld [vmem:[%s4 + $0x8] sm:$0xf]
      %v388 = vld [vmem:[%s4 + $0xc] sm:$0xf]
      %v389 = vld [vmem:[%s2] sm:$0x1]
      %v391 = vlaneseq
      %v392 = vshrl.u32 %v391, 7
      %v393 = vsub.s32 0, %v392
      %v394 = vrot.slane %v389, %v393
      %v400 = vunpack.c.l.b16 %v385
      %v401 = vunpack.c.l.b16 %v386
      %v402 = vunpack.c.l.b16 %v387
      %v403 = vunpack.c.l.b16 %v388
      %v404 = vpack.c.b16 %v401, %v400
      %v405 = vpack.c.b16 %v403, %v402
      %v409 = vsel %vm344, %v384, 0
      %411 = vmatprep.subr.bf16.mxu0 0
      %412 = vmatpush1.bf16.msra.mxu0 %v404
      %413 = vmatprep.subr.bf16.mxu0 0
      %414 = vmatpush1.bf16.msra.mxu0 %v405
      %415 = vmatprep.subr.bf16.mxu0 0
      %416 = vmatpush1.bf16.msra.mxu0 0
      %417 = vmatprep.subr.bf16.mxu0 0
      %418 = vmatpush1.bf16.msra.mxu0 0
      %419 = vmatprep.subr.bf16.mxu0 0
      %420 = vmatpush1.bf16.msra.mxu0 0
      %421 = vmatprep.subr.bf16.mxu0 0
      %422 = vmatpush1.bf16.msra.mxu0 0
      %423 = vmatprep.subr.bf16.mxu0 0
      %424 = vmatpush1.bf16.msra.mxu0 0
      %425 = vmatprep.subr.bf16.mxu0 0
      %426 = vmatpush1.bf16.msra.mxu0 0
      %427 = vmatprep.subr.bf16.mxu0 0
      %428 = vmatpush1.bf16.msra.mxu0 0
      %429 = vmatprep.subr.bf16.mxu0 0
      %430 = vmatpush1.bf16.msra.mxu0 0
      %431 = vmatprep.subr.bf16.mxu0 0
      %432 = vmatpush1.bf16.msra.mxu0 0
      %433 = vmatprep.subr.bf16.mxu0 0
      %434 = vmatpush1.bf16.msra.mxu0 0
      %435 = vmatprep.subr.bf16.mxu0 0
      %436 = vmatpush1.bf16.msra.mxu0 0
      %437 = vmatprep.subr.bf16.mxu0 0
      %438 = vmatpush1.bf16.msra.mxu0 0
      %439 = vmatprep.subr.bf16.mxu0 0
      %440 = vmatpush1.bf16.msra.mxu0 0
      %441 = vmatprep.subr.bf16.mxu0 0
      %442 = vmatpush1.bf16.msra.mxu0 0
      %443 = vmatprep.mubr.bf16.mxu0 0
      %444 = vmatmul.mubr.bf16.gmra.mrb[0].mxu0 %v409
      %v445 = vpop.f32.mrb[0].mxu0
      %v446 = vadd.f32 %v394, %v445
      %v447 = vpop.f32.mrb[0].mxu0
      %v448 = vpop.f32.mrb[0].mxu0
      %v449 = vadd.f32 %v394, %v448
      %v450 = vpop.f32.mrb[0].mxu0
      %451 = vdwg.mxu0
      %vm452 = vcmask 519168
      %453 = vst.msk [vmem:[%s224] sm:$0xf] %vm452, 0
      %454 = vst.msk [vmem:[%s224 + $0x4] sm:$0xf] %vm452, 0
      %455 = vst.msk [vmem:[%s224 + $0x8] sm:$0xf] %vm452, 0
      %456 = vst.msk [vmem:[%s224 + $0xc] sm:$0xf] %vm452, 0
      %457 = vst.msk [vmem:[%s224 + $0x10] sm:$0xf] %vm452, 0
      %458 = vst.msk [vmem:[%s224 + $0x14] sm:$0xf] %vm452, 0
      %459 = vst.msk [vmem:[%s224 + $0x18] sm:$0xf] %vm452, 0
      %460 = vst.msk [vmem:[%s224 + $0x1c] sm:$0xf] %vm452, 0
      %461 = vst.msk [vmem:[%s224 + $0x20] sm:$0xf] %vm452, 0
      %462 = vst.msk [vmem:[%s224 + $0x24] sm:$0xf] %vm452, 0
      %463 = vst.msk [vmem:[%s224 + $0x28] sm:$0xf] %vm452, 0
      %464 = vst.msk [vmem:[%s224 + $0x2c] sm:$0xf] %vm452, 0
      %465 = vst.msk [vmem:[%s224 + $0x30] sm:$0xf] %vm452, 0
      %466 = vst.msk [vmem:[%s224 + $0x34] sm:$0xf] %vm452, 0
      %467 = vst.msk [vmem:[%s224 + $0x38] sm:$0xf] %vm452, 0
      %468 = vst.msk [vmem:[%s224 + $0x3c] sm:$0xf] %vm452, 0
      %v469 = vpack.c.bf16 %v449, %v446
      %v471 = vunpack.c.l.b16 %v469
      %v472 = vunpack.c.h.b16 %v469
      %v473 = vpack.c.b16 %v471, %v471
      %v474 = vpack.c.b16 %v472, %v472
      %477 = vst.msk [vmem:[%s224] sm:$0xf] %vm452, %v473
      %478 = vst.msk [vmem:[%s224 + $0x4] sm:$0xf] %vm452, %v474
      %p479 = scmp.lt.s32.totalorder %s16, 1
      %s480 = scalar_select %p479, %s16, 1
      %s481 = smul.addr %s480, 16
      %s482 = smul.addr %s481, 4
      %s483 = scalar_lea.vmem %s5, %s482
      // Predicated region
      $region41: #{tpu_custom_call.1} parent=39 // pred_check
        %p484 = pneg %p144
      $region42: #{tpu_custom_call.1} parent=39 // pred_check_branch
        %486 = sbr.rel (%p484) target = $region44
      $region43: #{tpu_custom_call.1} parent=39 // pred_region
        _
      $region44: #{tpu_custom_call.1} parent=39 // pred_fallthru
        _
    $region40: #{tpu_custom_call.1} parent=5 // pred_fallthru
      _
    %p487 = scmp.le.s32.totalorder 2, %s11
    // Predicated region
    $region45: #{tpu_custom_call.1} parent=5 // pred_check
      %p488 = pneg %p487
    $region46: #{tpu_custom_call.1} parent=5 // pred_check_branch
      %490 = sbr.rel (%p488) target = $region48
    $region47: #{tpu_custom_call.1} parent=5 // pred_region
      %s491 = ssub.s32 %s11, 2
      // Predicated region
      $region49: #{tpu_custom_call.1} parent=47 // pred_check
        %p492 = pneg %p150
      $region50: #{tpu_custom_call.1} parent=47 // pred_check_branch
        %494 = sbr.rel (%p492) target = $region52
      $region51: #{tpu_custom_call.1} parent=47 // pred_region
        %p495 = scmp.lt.s32.totalorder %s17, 1
        %s496 = scalar_select %p495, %s17, 1
        %s497 = smul.addr %s496, 16
        %s498 = smul.addr %s497, 4
        %s499 = scalar_lea.vmem %s5, %s498
      $region52: #{tpu_custom_call.1} parent=47 // pred_fallthru
        _
    $region48: #{tpu_custom_call.1} parent=5 // pred_fallthru
      _
  $region6: #{tpu_custom_call.1} parent=0 // loop_footer
    %s15 = sadd.s32 1, %s11
  $region7: #{tpu_custom_call.1} parent=0 // loop_footer_branch
    %10 = sbr.rel target = $region3
  $region8: #{tpu_custom_call.1} parent=0 // loop_exit
    _

</llo_original>
